<compile_context>
chip_gen: v6e
topology: v6e:2x2x1
jax: 0.10.0
libtpu: 0.0.40
codegen_flags: <defaults>
</compile_context>

<pallas_src>
import functools

import jax
import jax.numpy as jnp
from jax import lax
from jax.experimental import pallas as pl
from jax.experimental.pallas import tpu as pltpu


def _round_up(v, m):
    return ((v + m - 1) // m) * m


def _vmem_caps():
    """Generation-aware (tile_budget, fused_budget, vmem_limit) in bytes."""
    cap = 64 << 20
    try:
        cap = int(pltpu.get_tpu_info().vmem_capacity_bytes)
    except Exception:
        pass
    if cap >= 100 << 20:
        # 128 MiB parts (v5e / v6e): large tiles, keep vmem_limit well below physical.
        return 72 << 20, 56 << 20, 100 << 20
    # 64 MiB parts (v7x): leave headroom below physical VMEM for compiler scratch.
    return 26 << 20, 22 << 20, 44 << 20


def _choose_block_n(n, c_pad, io_itemsize, block_n, tile_budget):
    """Largest row-tile (aligned for the packed dtype) that fits the VMEM budget."""
    align = max(8, 32 // max(1, io_itemsize))     # f32: 8, bf16: 16, int8/fp8: 32

    def est(tn):
        blk = tn * c_pad
        # double-buffered x in + y out, ~3 f32 working temporaries, resident vectors
        return 2 * 2 * blk * io_itemsize + 3 * blk * 4 + 16 * c_pad * 4

    tn = max(align, (min(block_n, _round_up(n, align)) // align) * align)
    while tn > align and est(tn) > tile_budget:
        tn = max(align, ((tn // 2) // align) * align)
    return tn


# --------------------------------------------------------------------------
# Fused fast path: whole x resident in VMEM, single pallas_call.
# --------------------------------------------------------------------------
def _fused_kernel(mix_ref, x_ref, w_ref, b_ref, rm_ref, rv_ref,
                  y_ref, nrm_ref, nrv_ref, *, n, c, eps, momentum):
    x = x_ref[...].astype(jnp.float32)                           # (n, c_pad)

    # ---- per-feature (batch-norm) statistics, unbiased (n-1) ----
    inv_n = 1.0 / n
    inv_nm1 = (1.0 / (n - 1)) if n > 1 else float("nan")
    mean_bn = jnp.sum(x, axis=0, keepdims=True) * inv_n
    var_bn = (jnp.sum(x * x, axis=0, keepdims=True) - n * mean_bn * mean_bn) * inv_nm1
    var_bn = jnp.maximum(var_bn, 0.0)                            # clamp cancellation

    nrm_ref[...] = momentum * rm_ref[...] + (1.0 - momentum) * mean_bn
    nrv_ref[...] = momentum * rv_ref[...] + (1.0 - momentum) * var_bn

    # ---- per-row (layer-norm) statistics, unbiased (c-1) ----
    # Zero-padded feature columns contribute nothing; denominators use true c.
    inv_c = 1.0 / c
    inv_cm1 = (1.0 / (c - 1)) if c > 1 else float("nan")
    mean_ln = jnp.sum(x, axis=1, keepdims=True) * inv_c
    var_ln = (jnp.sum(x * x, axis=1, keepdims=True) - c * mean_ln * mean_ln) * inv_cm1
    var_ln = jnp.maximum(var_ln, 0.0)

    mean = mix_ref[0] * mean_ln + mix_ref[1] * mean_bn
    var = mix_ref[2] * var_ln + mix_ref[3] * var_bn + eps
    y = (x - mean) * lax.rsqrt(var) * w_ref[...] + b_ref[...]
    y_ref[...] = y.astype(y_ref.dtype)


# --------------------------------------------------------------------------
# Streaming two-pass path.
# --------------------------------------------------------------------------
def _partial_stats_kernel(x_ref, sum_ref, sumsq_ref):
    """Pass 1: per-core partial column sum / sum-of-squares accumulation."""
    @pl.when(pl.program_id(1) == 0)
    def _():
        sum_ref[...] = jnp.zeros_like(sum_ref)
        sumsq_ref[...] = jnp.zeros_like(sumsq_ref)

    x = x_ref[...].astype(jnp.float32)                           # (tn, c_pad)
    # Zero-padded rows contribute nothing.
    sum_ref[...] += jnp.sum(x, axis=0, keepdims=True)
    sumsq_ref[...] += jnp.sum(x * x, axis=0, keepdims=True)


def _normalize_kernel(mix_ref, x_ref, w_ref, b_ref, bnm_ref, bnv_ref, y_ref, *, c):
    """Pass 2: per-row LN stats, mix with pre-folded BN terms, normalize."""
    x = x_ref[...].astype(jnp.float32)                           # (tn, c_pad)

    inv_c = 1.0 / c
    inv_cm1 = (1.0 / (c - 1)) if c > 1 else float("nan")
    mean_ln = jnp.sum(x, axis=1, keepdims=True) * inv_c
    var_ln = (jnp.sum(x * x, axis=1, keepdims=True) - c * mean_ln * mean_ln) * inv_cm1
    var_ln = jnp.maximum(var_ln, 0.0)

    mean = mix_ref[0] * mean_ln + bnm_ref[...]                   # bnm = mw1 * mean_bn
    var = mix_ref[1] * var_ln + bnv_ref[...]                     # bnv = vw1 * var_bn + eps
    y = (x - mean) * lax.rsqrt(var) * w_ref[...] + b_ref[...]
    y_ref[...] = y.astype(y_ref.dtype)


def switchnorm1d(x, weight, bias, mean_weight, var_weight,
                 running_mean, running_var, *, eps=1e-5, momentum=0.997,
                 block_n=1024, force_two_pass=False):
    """Training-mode SwitchNorm1d forward.

    Returns (y, new_running_mean, new_running_var).
    """
    n, c = x.shape
    io_itemsize = jnp.dtype(x.dtype).itemsize
    tile_budget, fused_budget, vmem_limit = _vmem_caps()

    # Lane-dense feature dim: pad C to a multiple of 128 so stores are
    # unmasked vst.  Zero padding is neutral for every sum/sumsq; padded
    # columns are sliced off before returning.
    c_pad = _round_up(c, 128)
    pad_c = c_pad - c

    w_f32 = jnp.pad(weight.reshape(1, c).astype(jnp.float32), ((0, 0), (0, pad_c)))
    b_f32 = jnp.pad(bias.reshape(1, c).astype(jnp.float32), ((0, 0), (0, pad_c)))
    rm_f32 = jnp.pad(running_mean.reshape(1, c).astype(jnp.float32), ((0, 0), (0, pad_c)))
    rv_f32 = jnp.pad(running_var.reshape(1, c).astype(jnp.float32), ((0, 0), (0, pad_c)))

    # Mixing softmax (2 elements each): computed once outside the kernels.
    mw = jax.nn.softmax(mean_weight.reshape(-1).astype(jnp.float32))
    vw = jax.nn.softmax(var_weight.reshape(-1).astype(jnp.float32))

    smem_spec = pl.BlockSpec(memory_space=pltpu.MemorySpace.SMEM)

    # ---------------- fused fast path (x fits VMEM) ----------------
    fused_bytes = n * c_pad * (4 * io_itemsize + 16) + 32 * c_pad * 4
    if (not force_two_pass) and fused_bytes <= fused_budget:
        x_p = x if pad_c == 0 else jnp.pad(x, ((0, 0), (0, pad_c)))
        mix = jnp.concatenate([mw, vw])                          # (4,) SMEM scalars

        full_spec = pl.BlockSpec((n, c_pad), lambda i: (0, 0))
        vec_spec = pl.BlockSpec((1, c_pad), lambda i: (0, 0))

        y_p, nrm, nrv = pl.pallas_call(
            functools.partial(_fused_kernel, n=n, c=c, eps=eps, momentum=momentum),
            grid=(1,),
            in_specs=[smem_spec, full_spec, vec_spec, vec_spec, vec_spec, vec_spec],
            out_specs=(full_spec, vec_spec, vec_spec),
            out_shape=(jax.ShapeDtypeStruct((n, c_pad), x.dtype),
                       jax.ShapeDtypeStruct((1, c_pad), jnp.float32),
                       jax.ShapeDtypeStruct((1, c_pad), jnp.float32)),
            compiler_params=pltpu.CompilerParams(
                dimension_semantics=("arbitrary",),
                vmem_limit_bytes=vmem_limit),
            cost_estimate=pl.CostEstimate(
                flops=14 * n * c_pad,
                transcendentals=n * c_pad,
                bytes_accessed=2 * n * c_pad * io_itemsize + 12 * c_pad * 4),
        )(mix, x_p, w_f32, b_f32, rm_f32, rv_f32)

        y = y_p if pad_c == 0 else y_p[:, :c]
        return (y,
                nrm[:, :c].astype(running_mean.dtype),
                nrv[:, :c].astype(running_var.dtype))

    # ---------------- streaming two-pass path ----------------
    tn = _choose_block_n(n, c_pad, io_itemsize, block_n, tile_budget)
    tiles = (n + tn - 1) // tn
    tiles_per_core = (tiles + 1) // 2            # dual-TC split for pass 1 (v7x)
    n_pad = 2 * tiles_per_core * tn
    num_tiles = n_pad // tn

    x_p = x
    if n_pad != n or pad_c:
        x_p = jnp.pad(x, ((0, n_pad - n), (0, pad_c)))

    # ---- pass 1: per-core partial column sums (leading axis megacore-parallel) ----
    x_spec1 = pl.BlockSpec((tn, c_pad),
                           lambda core, i: (core * tiles_per_core + i, 0))
    part_spec = pl.BlockSpec((1, c_pad), lambda core, i: (core, 0))

    psum, psumsq = pl.pallas_call(
        _partial_stats_kernel,
        grid=(2, tiles_per_core),
        in_specs=[x_spec1],
        out_specs=(part_spec, part_spec),
        out_shape=(jax.ShapeDtypeStruct((2, c_pad), jnp.float32),) * 2,
        compiler_params=pltpu.CompilerParams(
            dimension_semantics=("parallel", "arbitrary"),
            vmem_limit_bytes=vmem_limit),
        cost_estimate=pl.CostEstimate(
            flops=3 * n_pad * c_pad,
            transcendentals=0,
            bytes_accessed=n_pad * c_pad * io_itemsize + 4 * c_pad * 4),
    )(x_p)

    # ---- tiny finalize in the wrapper: combine partials, BN stats, pre-fold ----
    inv_nm1 = (1.0 / (n - 1)) if n > 1 else float("nan")
    col_sum = jnp.sum(psum, axis=0, keepdims=True)
    col_sumsq = jnp.sum(psumsq, axis=0, keepdims=True)
    mean_bn = col_sum * (1.0 / n)
    var_bn = jnp.maximum((col_sumsq - n * mean_bn * mean_bn) * inv_nm1, 0.0)
    nrm = momentum * rm_f32 + (1.0 - momentum) * mean_bn
    nrv = momentum * rv_f32 + (1.0 - momentum) * var_bn
    bn_mean_scaled = mw[1] * mean_bn                 # pre-folded mixing weight
    bn_var_eps = vw[1] * var_bn + eps                # pre-folded mixing weight + eps
    mix2 = jnp.stack([mw[0], vw[0]])                 # (2,) SMEM scalars

    # ---- pass 2: normalize (per-row LN stats + pre-folded BN terms) ----
    x_spec2 = pl.BlockSpec((tn, c_pad), lambda i: (i, 0))
    vec_spec2 = pl.BlockSpec((1, c_pad), lambda i: (0, 0))   # resident across grid

    y_p = pl.pallas_call(
        functools.partial(_normalize_kernel, c=c),
        grid=(num_tiles,),
        in_specs=[smem_spec, x_spec2, vec_spec2, vec_spec2, vec_spec2, vec_spec2],
        out_specs=x_spec2,
        out_shape=jax.ShapeDtypeStruct((n_pad, c_pad), x.dtype),
        compiler_params=pltpu.CompilerParams(
            dimension_semantics=("parallel",),
            vmem_limit_bytes=vmem_limit),
        cost_estimate=pl.CostEstimate(
            flops=10 * n_pad * c_pad,
            transcendentals=n_pad * c_pad,
            bytes_accessed=2 * n_pad * c_pad * io_itemsize + 4 * c_pad * 4),
    )(mix2, x_p, w_f32, b_f32, bn_mean_scaled, bn_var_eps)

    return (y_p[:n, :c],
            nrm[:, :c].astype(running_mean.dtype),
            nrv[:, :c].astype(running_var.dtype))


def _reference(x, weight, bias, mean_weight, var_weight,
               running_mean, running_var, eps=1e-5, momentum=0.997):
    mean_ln = jnp.mean(x, axis=1, keepdims=True)
    var_ln = jnp.var(x, axis=1, keepdims=True, ddof=1)
    mean_bn = jnp.mean(x, axis=0, keepdims=True)
    var_bn = jnp.var(x, axis=0, keepdims=True, ddof=1)
    nrm = momentum * running_mean + (1 - momentum) * mean_bn
    nrv = momentum * running_var + (1 - momentum) * var_bn
    mw = jax.nn.softmax(mean_weight)
    vw = jax.nn.softmax(var_weight)
    mean = mw[0] * mean_ln + mw[1] * mean_bn
    var = vw[0] * var_ln + vw[1] * var_bn
    y = (x - mean) / jnp.sqrt(var + eps) * weight + bias
    return y, nrm, nrv


if __name__ == "__main__":
    key = jax.random.PRNGKey(0)
    kx, kw, kb, krm, krv = jax.random.split(key, 5)

    # Small shapes; C = 96 exercises lane padding (to 128), N = 50 exercises
    # multi-tile accumulation + row padding on the streaming path.
    N, C = 50, 96
    x = jax.random.normal(kx, (N, C), dtype=jnp.float32)
    weight = 1.0 + 0.1 * jax.random.normal(kw, (1, C), dtype=jnp.float32)
    bias = 0.1 * jax.random.normal(kb, (1, C), dtype=jnp.float32)
    mean_weight = jnp.array([0.3, 1.2], jnp.float32)
    var_weight = jnp.array([1.5, -0.4], jnp.float32)
    running_mean = 0.1 * jax.random.normal(krm, (1, C), dtype=jnp.float32)
    running_var = jnp.abs(jax.random.normal(krv, (1, C), dtype=jnp.float32))

    y_ref, rm_ref, rv_ref = _reference(
        x, weight, bias, mean_weight, var_weight, running_mean, running_var)

    # Fused single-kernel fast path (whole x resident in VMEM).
    out_fused = switchnorm1d(
        x, weight, bias, mean_weight, var_weight, running_mean, running_var)
    jax.block_until_ready(out_fused)

    # Streaming two-pass path (dual-core partial stats + tiled normalize).
    out_stream = switchnorm1d(
        x, weight, bias, mean_weight, var_weight, running_mean, running_var,
        block_n=16, force_two_pass=True)
    jax.block_until_ready(out_stream)

    for y, nrm, nrv in (out_fused, out_stream):
        assert jnp.allclose(y, y_ref, atol=1e-5, rtol=1e-4)
        assert jnp.allclose(nrm, rm_ref, atol=1e-5, rtol=1e-4)
        assert jnp.allclose(nrv, rv_ref, atol=1e-5, rtol=1e-4)

    print("KERNEL_OK")
</pallas_src>

<mosaic_0001>
module attributes {stable_mosaic.version = 11 : i64} {
  func.func @_fused_kernel(%arg0: i32, %arg1: memref<4xf32, #tpu.memory_space<smem>>, %arg2: memref<50x128xf32, #tpu.memory_space<vmem>>, %arg3: memref<1x128xf32, #tpu.memory_space<vmem>>, %arg4: memref<1x128xf32, #tpu.memory_space<vmem>>, %arg5: memref<1x128xf32, #tpu.memory_space<vmem>>, %arg6: memref<1x128xf32, #tpu.memory_space<vmem>>, %arg7: memref<50x128xf32, #tpu.memory_space<vmem>>, %arg8: memref<1x128xf32, #tpu.memory_space<vmem>>, %arg9: memref<1x128xf32, #tpu.memory_space<vmem>>) attributes {dimension_semantics = [#tpu.dimension_semantics<arbitrary>], iteration_bounds = array<i64: 1>, scalar_prefetch = 0 : i64, scratch_operands = 0 : i64, tpu.core_type = #tpu.core_type<tc>, window_params = [{transform_indices = @transform_0, window_bounds = array<i64: 4>}, {pipeline_mode = #tpu.pipeline_mode<synchronous>, transform_indices = @transform_1, window_bounds = array<i64: 50, 128>}, {pipeline_mode = #tpu.pipeline_mode<synchronous>, transform_indices = @transform_2, window_bounds = array<i64: 1, 128>}, {pipeline_mode = #tpu.pipeline_mode<synchronous>, transform_indices = @transform_3, window_bounds = array<i64: 1, 128>}, {pipeline_mode = #tpu.pipeline_mode<synchronous>, transform_indices = @transform_4, window_bounds = array<i64: 1, 128>}, {pipeline_mode = #tpu.pipeline_mode<synchronous>, transform_indices = @transform_5, window_bounds = array<i64: 1, 128>}, {pipeline_mode = #tpu.pipeline_mode<synchronous>, transform_indices = @transform_6, window_bounds = array<i64: 50, 128>}, {pipeline_mode = #tpu.pipeline_mode<synchronous>, transform_indices = @transform_7, window_bounds = array<i64: 1, 128>}, {pipeline_mode = #tpu.pipeline_mode<synchronous>, transform_indices = @transform_8, window_bounds = array<i64: 1, 128>}]} {
    %c0 = arith.constant 0 : index
    %c0_0 = arith.constant 0 : index
    %0 = vector.load %arg2[%c0, %c0_0] : memref<50x128xf32, #tpu.memory_space<vmem>>, vector<50x128xf32>
    %cst = arith.constant dense<0.000000e+00> : vector<128xf32>
    %1 = vector.multi_reduction <add>, %0, %cst [0] : vector<50x128xf32> to vector<128xf32>
    %2 = vector.shape_cast %1 : vector<128xf32> to vector<1x128xf32>
    %cst_1 = arith.constant 2.000000e-02 : f32
    %3 = vector.broadcast %cst_1 : f32 to vector<1x128xf32>
    %4 = arith.mulf %2, %3 : vector<1x128xf32>
    %5 = arith.mulf %0, %0 : vector<50x128xf32>
    %cst_2 = arith.constant dense<0.000000e+00> : vector<128xf32>
    %6 = vector.multi_reduction <add>, %5, %cst_2 [0] : vector<50x128xf32> to vector<128xf32>
    %7 = vector.shape_cast %6 : vector<128xf32> to vector<1x128xf32>
    %cst_3 = arith.constant 5.000000e+01 : f32
    %8 = vector.broadcast %cst_3 : f32 to vector<1x128xf32>
    %9 = arith.mulf %8, %4 : vector<1x128xf32>
    %10 = arith.mulf %9, %4 : vector<1x128xf32>
    %11 = arith.subf %7, %10 : vector<1x128xf32>
    %cst_4 = arith.constant 0.0204081628 : f32
    %12 = vector.broadcast %cst_4 : f32 to vector<1x128xf32>
    %13 = arith.mulf %11, %12 : vector<1x128xf32>
    %cst_5 = arith.constant 0.000000e+00 : f32
    %14 = vector.broadcast %cst_5 : f32 to vector<1x128xf32>
    %15 = arith.maximumf %13, %14 : vector<1x128xf32>
    %c0_6 = arith.constant 0 : index
    %c0_7 = arith.constant 0 : index
    %16 = vector.load %arg5[%c0_6, %c0_7] : memref<1x128xf32, #tpu.memory_space<vmem>>, vector<1x128xf32>
    %cst_8 = arith.constant 0.996999979 : f32
    %17 = vector.broadcast %cst_8 : f32 to vector<1x128xf32>
    %18 = arith.mulf %17, %16 : vector<1x128xf32>
    %cst_9 = arith.constant 3.000000e-03 : f32
    %19 = vector.broadcast %cst_9 : f32 to vector<1x128xf32>
    %20 = arith.mulf %19, %4 : vector<1x128xf32>
    %21 = arith.addf %18, %20 : vector<1x128xf32>
    %c0_10 = arith.constant 0 : index
    %c0_11 = arith.constant 0 : index
    %22 = vector.load %arg8[%c0_10, %c0_11] : memref<1x128xf32, #tpu.memory_space<vmem>>, vector<1x128xf32>
    tpu.vector_store %arg8[%c0_10, %c0_11], %21 {strides = array<i32>} : memref<1x128xf32, #tpu.memory_space<vmem>>, vector<1x128xf32>,
    %c0_12 = arith.constant 0 : index
    %c0_13 = arith.constant 0 : index
    %23 = vector.load %arg6[%c0_12, %c0_13] : memref<1x128xf32, #tpu.memory_space<vmem>>, vector<1x128xf32>
    %cst_14 = arith.constant 0.996999979 : f32
    %24 = vector.broadcast %cst_14 : f32 to vector<1x128xf32>
    %25 = arith.mulf %24, %23 : vector<1x128xf32>
    %cst_15 = arith.constant 3.000000e-03 : f32
    %26 = vector.broadcast %cst_15 : f32 to vector<1x128xf32>
    %27 = arith.mulf %26, %15 : vector<1x128xf32>
    %28 = arith.addf %25, %27 : vector<1x128xf32>
    %c0_16 = arith.constant 0 : index
    %c0_17 = arith.constant 0 : index
    %29 = vector.load %arg9[%c0_16, %c0_17] : memref<1x128xf32, #tpu.memory_space<vmem>>, vector<1x128xf32>
    tpu.vector_store %arg9[%c0_16, %c0_17], %28 {strides = array<i32>} : memref<1x128xf32, #tpu.memory_space<vmem>>, vector<1x128xf32>,
    %cst_18 = arith.constant dense<0.000000e+00> : vector<50xf32>
    %30 = vector.multi_reduction <add>, %0, %cst_18 [1] : vector<50x128xf32> to vector<50xf32>
    %31 = vector.shape_cast %30 : vector<50xf32> to vector<50x1xf32>
    %cst_19 = arith.constant 0.010416667 : f32
    %32 = vector.broadcast %cst_19 : f32 to vector<50x1xf32>
    %33 = arith.mulf %31, %32 : vector<50x1xf32>
    %34 = arith.mulf %0, %0 : vector<50x128xf32>
    %cst_20 = arith.constant dense<0.000000e+00> : vector<50xf32>
    %35 = vector.multi_reduction <add>, %34, %cst_20 [1] : vector<50x128xf32> to vector<50xf32>
    %36 = vector.shape_cast %35 : vector<50xf32> to vector<50x1xf32>
    %cst_21 = arith.constant 9.600000e+01 : f32
    %37 = vector.broadcast %cst_21 : f32 to vector<50x1xf32>
    %38 = arith.mulf %37, %33 : vector<50x1xf32>
    %39 = arith.mulf %38, %33 : vector<50x1xf32>
    %40 = arith.subf %36, %39 : vector<50x1xf32>
    %cst_22 = arith.constant 0.0105263162 : f32
    %41 = vector.broadcast %cst_22 : f32 to vector<50x1xf32>
    %42 = arith.mulf %40, %41 : vector<50x1xf32>
    %cst_23 = arith.constant 0.000000e+00 : f32
    %43 = vector.broadcast %cst_23 : f32 to vector<50x1xf32>
    %44 = arith.maximumf %42, %43 : vector<50x1xf32>
    %c0_24 = arith.constant 0 : index
    %45 = memref.load %arg1[%c0_24] : memref<4xf32, #tpu.memory_space<smem>>
    %46 = vector.broadcast %45 : f32 to vector<50x1xf32>
    %47 = arith.mulf %46, %33 : vector<50x1xf32>
    %c1 = arith.constant 1 : index
    %48 = memref.load %arg1[%c1] : memref<4xf32, #tpu.memory_space<smem>>
    %49 = vector.broadcast %48 : f32 to vector<1x128xf32>
    %50 = arith.mulf %49, %4 : vector<1x128xf32>
    %51 = vector.broadcast %47 : vector<50x1xf32> to vector<50x128xf32>
    %52 = vector.broadcast %50 : vector<1x128xf32> to vector<50x128xf32>
    %53 = arith.addf %51, %52 : vector<50x128xf32>
    %c2 = arith.constant 2 : index
    %54 = memref.load %arg1[%c2] : memref<4xf32, #tpu.memory_space<smem>>
    %55 = vector.broadcast %54 : f32 to vector<50x1xf32>
    %56 = arith.mulf %55, %44 : vector<50x1xf32>
    %c3 = arith.constant 3 : index
    %57 = memref.load %arg1[%c3] : memref<4xf32, #tpu.memory_space<smem>>
    %58 = vector.broadcast %57 : f32 to vector<1x128xf32>
    %59 = arith.mulf %58, %15 : vector<1x128xf32>
    %60 = vector.broadcast %56 : vector<50x1xf32> to vector<50x128xf32>
    %61 = vector.broadcast %59 : vector<1x128xf32> to vector<50x128xf32>
    %62 = arith.addf %60, %61 : vector<50x128xf32>
    %cst_25 = arith.constant 9.99999974E-6 : f32
    %63 = vector.broadcast %cst_25 : f32 to vector<50x128xf32>
    %64 = arith.addf %62, %63 : vector<50x128xf32>
    %65 = arith.subf %0, %53 : vector<50x128xf32>
    %66 = math.rsqrt %64 : vector<50x128xf32>
    %67 = arith.mulf %65, %66 : vector<50x128xf32>
    %c0_26 = arith.constant 0 : index
    %c0_27 = arith.constant 0 : index
    %68 = vector.load %arg3[%c0_26, %c0_27] : memref<1x128xf32, #tpu.memory_space<vmem>>, vector<1x128xf32>
    %69 = vector.broadcast %68 : vector<1x128xf32> to vector<50x128xf32>
    %70 = arith.mulf %67, %69 : vector<50x128xf32>
    %c0_28 = arith.constant 0 : index
    %c0_29 = arith.constant 0 : index
    %71 = vector.load %arg4[%c0_28, %c0_29] : memref<1x128xf32, #tpu.memory_space<vmem>>, vector<1x128xf32>
    %72 = vector.broadcast %71 : vector<1x128xf32> to vector<50x128xf32>
    %73 = arith.addf %70, %72 : vector<50x128xf32>
    %c0_30 = arith.constant 0 : index
    %c0_31 = arith.constant 0 : index
    %74 = vector.load %arg7[%c0_30, %c0_31] : memref<50x128xf32, #tpu.memory_space<vmem>>, vector<50x128xf32>
    tpu.vector_store %arg7[%c0_30, %c0_31], %73 {strides = array<i32>} : memref<50x128xf32, #tpu.memory_space<vmem>>, vector<50x128xf32>,
    return
  }
  func.func @transform_0(%arg0: i32) -> i32 {
    %c0_i32 = arith.constant 0 : i32
    %c0_i32_0 = arith.constant 0 : i32
    return %c0_i32 : i32
  }
  func.func @transform_1(%arg0: i32) -> (i32, i32) {
    %c0_i32 = arith.constant 0 : i32
    %c0_i32_0 = arith.constant 0 : i32
    %c0_i32_1 = arith.constant 0 : i32
    return %c0_i32, %c0_i32_0 : i32, i32
  }
  func.func @transform_2(%arg0: i32) -> (i32, i32) {
    %c0_i32 = arith.constant 0 : i32
    %c0_i32_0 = arith.constant 0 : i32
    %c0_i32_1 = arith.constant 0 : i32
    return %c0_i32, %c0_i32_0 : i32, i32
  }
  func.func @transform_3(%arg0: i32) -> (i32, i32) {
    %c0_i32 = arith.constant 0 : i32
    %c0_i32_0 = arith.constant 0 : i32
    %c0_i32_1 = arith.constant 0 : i32
    return %c0_i32, %c0_i32_0 : i32, i32
  }
  func.func @transform_4(%arg0: i32) -> (i32, i32) {
    %c0_i32 = arith.constant 0 : i32
    %c0_i32_0 = arith.constant 0 : i32
    %c0_i32_1 = arith.constant 0 : i32
    return %c0_i32, %c0_i32_0 : i32, i32
  }
  func.func @transform_5(%arg0: i32) -> (i32, i32) {
    %c0_i32 = arith.constant 0 : i32
    %c0_i32_0 = arith.constant 0 : i32
    %c0_i32_1 = arith.constant 0 : i32
    return %c0_i32, %c0_i32_0 : i32, i32
  }
  func.func @transform_6(%arg0: i32) -> (i32, i32) {
    %c0_i32 = arith.constant 0 : i32
    %c0_i32_0 = arith.constant 0 : i32
    %c0_i32_1 = arith.constant 0 : i32
    return %c0_i32, %c0_i32_0 : i32, i32
  }
  func.func @transform_7(%arg0: i32) -> (i32, i32) {
    %c0_i32 = arith.constant 0 : i32
    %c0_i32_0 = arith.constant 0 : i32
    %c0_i32_1 = arith.constant 0 : i32
    return %c0_i32, %c0_i32_0 : i32, i32
  }
  func.func @transform_8(%arg0: i32) -> (i32, i32) {
    %c0_i32 = arith.constant 0 : i32
    %c0_i32_0 = arith.constant 0 : i32
    %c0_i32_1 = arith.constant 0 : i32
    return %c0_i32, %c0_i32_0 : i32, i32
  }
}

</mosaic_0001>

<llo_original>
// kernel: tpu_custom_call.1
$region0: #{tpu_custom_call.1}
  #allocation0 [shape = 'u32[]', space=smem, size = 0x4, offset = 0x4, fixed_abs, tag = 'smem constant byte address 0x4 - core index']
  #allocation1 [shape = 'u32[144,128]{1,0:T(1,128)}', space=vmem, size = 0x12000, scoped, tag = 'internal scratch']
  %s0 = inlined_call_operand.hbm [shape: f32[4], index: 0, kind: input, shape index: {}]
  %s1 = inlined_call_operand.hbm [shape: f32[50,128], index: 1, kind: input, shape index: {}]
  %s2 = inlined_call_operand.vmem [shape: f32[1,128], index: 2, kind: input, shape index: {}]
  %s3 = inlined_call_operand.vmem [shape: f32[1,128], index: 3, kind: input, shape index: {}]
  %s4 = inlined_call_operand.vmem [shape: f32[1,128], index: 4, kind: input, shape index: {}]
  %s5 = inlined_call_operand.vmem [shape: f32[1,128], index: 5, kind: input, shape index: {}]
  %s6 = inlined_call_operand.hbm [shape: f32[50,128], index: 6, kind: output, shape index: {0}]
  %s7 = inlined_call_operand.hbm [shape: f32[1,128], index: 7, kind: output, shape index: {1}]
  %s8 = inlined_call_operand.hbm [shape: f32[1,128], index: 8, kind: output, shape index: {2}]
  %9 = xla_tuple %s6, %s7, %s8
  %s10 = sld [smem:[#allocation0]]
  $region58: #{tpu_custom_call.1} parent=0
    _
  %s12 = ssub.s32 1, %s10
  %s13 = scalar_select 0, %s12, %s10
  $region1: #{tpu_custom_call.1} parent=0
    #allocation2 [shape = 'u8[512]{0}', space=smem, size = 0x200, scoped, tag = 'input window, operand 0, single buffered']
    #allocation3 [shape = 's32[1]{0}', space=sflag, size = 0x4, scoped, tag = 'scoped memory for tpu_custom_call.1']
    #allocation4 [shape = 's32[1]{0}', space=sflag, size = 0x4, scoped, tag = 'scoped memory for tpu_custom_call.1']
    #allocation5 [shape = 's32[1]{0}', space=sflag, size = 0x4, scoped, tag = 'scoped memory for tpu_custom_call.1']
    #allocation6 [shape = 'u8[28672]{0}', space=vmem, size = 0x7000, scoped, tag = 'input window, operand 1, single buffered']
    #allocation7 [shape = 'u8[28672]{0}', space=vmem, size = 0x7000, scoped, tag = 'output window, operand 0, single buffered']
    #allocation8 [shape = 'u8[512]{0}', space=vmem, size = 0x400, scoped, tag = 'output window, operand 1, single buffered']
    #allocation9 [shape = 's32[1]{0}', space=sflag, size = 0x4, scoped, tag = 'scoped memory for tpu_custom_call.1']
    #allocation10 [shape = 'u8[512]{0}', space=vmem, size = 0x400, scoped, tag = 'output window, operand 2, single buffered']
    %14 = vsyncpa [#allocation5], 0
    %15 = vsyncpa [#allocation3], 0
    %16 = vsyncpa [#allocation4], 0
    %17 = vsyncpa [#allocation9], 0
    // Predicated region
    $region2: #{tpu_custom_call.1} parent=1 // pred_check
      _
    $region3: #{tpu_custom_call.1} parent=1 // pred_check_branch
      %19 = sbr.rel (0) target = $region5
    $region4: #{tpu_custom_call.1} parent=1 // pred_region
      %s21 = ssub.s32 16, 16
      %22 = vsyncadd [#allocation5], %s21
      %25 = dma.hbm_to_smem %s0, 16, [#allocation2], [#allocation5]
    $region5: #{tpu_custom_call.1} parent=1 // pred_fallthru
      _
    // Predicated region
    $region6: #{tpu_custom_call.1} parent=1 // pred_check
      _
    $region7: #{tpu_custom_call.1} parent=1 // pred_check_branch
      %27 = sbr.rel (0) target = $region9
    $region8: #{tpu_custom_call.1} parent=1 // pred_region
      %s29 = ssub.s32 896, 896
      %30 = vsyncadd [#allocation3], %s29
      %s31 = sshll.u32 [#allocation6], 4
      %s32 = int_to_ptr.vmem [resolvable:$true] %s31
      %37 = dma.hbm_to_vmem [thread:$0]  %s1, 896, %s32, [#allocation3], 128, 128, 8
    $region9: #{tpu_custom_call.1} parent=1 // pred_fallthru
      _
    // Predicated region
    $region10: #{tpu_custom_call.1} parent=1 // pred_check
      _
    $region11: #{tpu_custom_call.1} parent=1 // pred_check_branch
      %39 = sbr.rel (0) target = $region13
    $region12: #{tpu_custom_call.1} parent=1 // pred_region
      _
    $region13: #{tpu_custom_call.1} parent=1 // pred_fallthru
      _
    // Predicated region
    $region14: #{tpu_custom_call.1} parent=1 // pred_check
      _
    $region15: #{tpu_custom_call.1} parent=1 // pred_check_branch
      %41 = sbr.rel (0) target = $region17
    $region16: #{tpu_custom_call.1} parent=1 // pred_region
      _
    $region17: #{tpu_custom_call.1} parent=1 // pred_fallthru
      _
    // Predicated region
    $region18: #{tpu_custom_call.1} parent=1 // pred_check
      _
    $region19: #{tpu_custom_call.1} parent=1 // pred_check_branch
      %43 = sbr.rel (0) target = $region21
    $region20: #{tpu_custom_call.1} parent=1 // pred_region
      _
    $region21: #{tpu_custom_call.1} parent=1 // pred_fallthru
      _
    // Predicated region
    $region22: #{tpu_custom_call.1} parent=1 // pred_check
      _
    $region23: #{tpu_custom_call.1} parent=1 // pred_check_branch
      %45 = sbr.rel (0) target = $region25
    $region24: #{tpu_custom_call.1} parent=1 // pred_region
      _
    $region25: #{tpu_custom_call.1} parent=1 // pred_fallthru
      _
    // Predicated region
    $region26: #{tpu_custom_call.1} parent=1 // pred_check
      _
    $region27: #{tpu_custom_call.1} parent=1 // pred_check_branch
      %47 = sbr.rel (0) target = $region29
    $region28: #{tpu_custom_call.1} parent=1 // pred_region
      %48 = dma.done [#allocation5], 16
    $region29: #{tpu_custom_call.1} parent=1 // pred_fallthru
      _
    // Predicated region
    $region30: #{tpu_custom_call.1} parent=1 // pred_check
      _
    $region31: #{tpu_custom_call.1} parent=1 // pred_check_branch
      %50 = sbr.rel (0) target = $region33
    $region32: #{tpu_custom_call.1} parent=1 // pred_region
      %51 = dma.done [#allocation3], 896
    $region33: #{tpu_custom_call.1} parent=1 // pred_fallthru
      _
    %52 = sfence
    %v53 = vld [vmem:[#allocation6] sm:$0xff]
    %v54 = vld [vmem:[#allocation6 + $0x8] sm:$0xff]
    %v55 = vld [vmem:[#allocation6 + $0x10] sm:$0xff]
    %v56 = vld [vmem:[#allocation6 + $0x18] sm:$0xff]
    %v57 = vld [vmem:[#allocation6 + $0x20] sm:$0xff]
    %v58 = vld [vmem:[#allocation6 + $0x28] sm:$0xff]
    %v59 = vld [vmem:[#allocation6 + $0x30] sm:$0x3]
    %v60 = vadd.f32 %v53, %v54
    %v61 = vadd.f32 %v60, %v55
    %v62 = vadd.f32 %v61, %v56
    %v63 = vadd.f32 %v62, %v57
    %v64 = vadd.f32 %v63, %v58
    %vm65 = vcmask 1041408
    %v66 = vsel %vm65, %v59, 0.0
    %v67 = vadd.f32 %v64, %v66
    %v68 = vrot.slane %v67, 4
    %v69 = vadd.f32 %v67, %v68
    %v70 = vrot.slane %v69, 2
    %v71 = vadd.f32 %v69, %v70
    %v72 = vrot.slane %v71, 1
    %v73 = vadd.f32 %v71, %v72
    %v74 = vmul.f32 %v73, 0.02
    %v75 = vmul.f32 %v53, %v53
    %v76 = vmul.f32 %v54, %v54
    %v77 = vmul.f32 %v55, %v55
    %v78 = vmul.f32 %v56, %v56
    %v79 = vmul.f32 %v57, %v57
    %v80 = vmul.f32 %v58, %v58
    %v81 = vmul.f32 %v59, %v59
    %v82 = vadd.f32 %v75, %v76
    %v83 = vadd.f32 %v82, %v77
    %v84 = vadd.f32 %v83, %v78
    %v85 = vadd.f32 %v84, %v79
    %v86 = vadd.f32 %v85, %v80
    %v87 = vsel %vm65, %v81, 0.0
    %v88 = vadd.f32 %v86, %v87
    %v89 = vrot.slane %v88, 4
    %v90 = vadd.f32 %v88, %v89
    %v91 = vrot.slane %v90, 2
    %v92 = vadd.f32 %v90, %v91
    %v93 = vrot.slane %v92, 1
    %v94 = vadd.f32 %v92, %v93
    %v95 = vmul.f32 %v74, 50.0
    %v96 = vmul.f32 %v95, %v74
    %v97 = vsub.f32 %v94, %v96
    %v98 = vmul.f32 %v97, 0.020408163
    %v99 = vmax.f32 %v98, 0.0
    %v100 = vld [vmem:[%s4] sm:$0x1]
    %v101 = vmul.f32 %v100, 0.997
    %v102 = vmul.f32 %v74, 0.003
    %v103 = vadd.f32 %v101, %v102
    %104 = vst [vmem:[#allocation8] sm:$0x1] %v103
    %v105 = vld [vmem:[%s5] sm:$0x1]
    %v106 = vmul.f32 %v105, 0.997
    %v107 = vmul.f32 %v99, 0.003
    %v108 = vadd.f32 %v106, %v107
    %109 = vst [vmem:[#allocation10] sm:$0x1] %v108
    %110 = vadd.xlane.f32.xlu0 %v53
    %v111 = vpop.xlane.xlu0 %110
    %112 = vadd.xlane.f32.xlu0 %v54
    %v113 = vpop.xlane.xlu0 %112
    %114 = vadd.xlane.f32.xlu0 %v55
    %v115 = vpop.xlane.xlu0 %114
    %116 = vadd.xlane.f32.xlu0 %v56
    %v117 = vpop.xlane.xlu0 %116
    %118 = vadd.xlane.f32.xlu0 %v57
    %v119 = vpop.xlane.xlu0 %118
    %120 = vadd.xlane.f32.xlu0 %v58
    %v121 = vpop.xlane.xlu0 %120
    %122 = vadd.xlane.f32.xlu0 %v66
    %v123 = vpop.xlane.xlu0 %122
    %v124 = vmul.f32 %v111, 0.010416667
    %v125 = vmul.f32 %v113, 0.010416667
    %v126 = vmul.f32 %v115, 0.010416667
    %v127 = vmul.f32 %v117, 0.010416667
    %v128 = vmul.f32 %v119, 0.010416667
    %v129 = vmul.f32 %v121, 0.010416667
    %v130 = vmul.f32 %v123, 0.010416667
    %131 = vadd.xlane.f32.xlu0 %v75
    %v132 = vpop.xlane.xlu0 %131
    %133 = vadd.xlane.f32.xlu0 %v76
    %v134 = vpop.xlane.xlu0 %133
    %135 = vadd.xlane.f32.xlu0 %v77
    %v136 = vpop.xlane.xlu0 %135
    %137 = vadd.xlane.f32.xlu0 %v78
    %v138 = vpop.xlane.xlu0 %137
    %139 = vadd.xlane.f32.xlu0 %v79
    %v140 = vpop.xlane.xlu0 %139
    %141 = vadd.xlane.f32.xlu0 %v80
    %v142 = vpop.xlane.xlu0 %141
    %143 = vadd.xlane.f32.xlu0 %v87
    %v144 = vpop.xlane.xlu0 %143
    %v145 = vmul.f32 %v124, 96.0
    %v146 = vmul.f32 %v125, 96.0
    %v147 = vmul.f32 %v126, 96.0
    %v148 = vmul.f32 %v127, 96.0
    %v149 = vmul.f32 %v128, 96.0
    %v150 = vmul.f32 %v129, 96.0
    %v151 = vmul.f32 %v130, 96.0
    %v152 = vmul.f32 %v145, %v124
    %v153 = vmul.f32 %v146, %v125
    %v154 = vmul.f32 %v147, %v126
    %v155 = vmul.f32 %v148, %v127
    %v156 = vmul.f32 %v149, %v128
    %v157 = vmul.f32 %v150, %v129
    %v158 = vmul.f32 %v151, %v130
    %v159 = vsub.f32 %v132, %v152
    %v160 = vsub.f32 %v134, %v153
    %v161 = vsub.f32 %v136, %v154
    %v162 = vsub.f32 %v138, %v155
    %v163 = vsub.f32 %v140, %v156
    %v164 = vsub.f32 %v142, %v157
    %v165 = vsub.f32 %v144, %v158
    %v166 = vmul.f32 %v159, 0.010526316
    %v167 = vmul.f32 %v160, 0.010526316
    %v168 = vmul.f32 %v161, 0.010526316
    %v169 = vmul.f32 %v162, 0.010526316
    %v170 = vmul.f32 %v163, 0.010526316
    %v171 = vmul.f32 %v164, 0.010526316
    %v172 = vmul.f32 %v165, 0.010526316
    %v173 = vmax.f32 %v166, 0.0
    %v174 = vmax.f32 %v167, 0.0
    %v175 = vmax.f32 %v168, 0.0
    %v176 = vmax.f32 %v169, 0.0
    %v177 = vmax.f32 %v170, 0.0
    %v178 = vmax.f32 %v171, 0.0
    %v179 = vmax.f32 %v172, 0.0
    %s180 = sld [smem:[#allocation2]]
    %v181 = vstv %s180
    %v182 = vmul.f32 %v181, %v124
    %v183 = vmul.f32 %v181, %v125
    %v184 = vmul.f32 %v181, %v126
    %v185 = vmul.f32 %v181, %v127
    %v186 = vmul.f32 %v181, %v128
    %v187 = vmul.f32 %v181, %v129
    %v188 = vmul.f32 %v181, %v130
    %s189 = sld [smem:[#allocation2 + $0x1]]
    %v190 = vstv %s189
    %v191 = vmul.f32 %v190, %v74
    %v192 = vadd.f32 %v182, %v191
    %v193 = vadd.f32 %v183, %v191
    %v194 = vadd.f32 %v184, %v191
    %v195 = vadd.f32 %v185, %v191
    %v196 = vadd.f32 %v186, %v191
    %v197 = vadd.f32 %v187, %v191
    %v198 = vadd.f32 %v188, %v191
    %s199 = sld [smem:[#allocation2 + $0x2]]
    %v200 = vstv %s199
    %v201 = vmul.f32 %v200, %v173
    %v202 = vmul.f32 %v200, %v174
    %v203 = vmul.f32 %v200, %v175
    %v204 = vmul.f32 %v200, %v176
    %v205 = vmul.f32 %v200, %v177
    %v206 = vmul.f32 %v200, %v178
    %v207 = vmul.f32 %v200, %v179
    %s208 = sld [smem:[#allocation2 + $0x3]]
    %v209 = vstv %s208
    %v210 = vmul.f32 %v209, %v99
    %v211 = vadd.f32 %v201, %v210
    %v212 = vadd.f32 %v202, %v210
    %v213 = vadd.f32 %v203, %v210
    %v214 = vadd.f32 %v204, %v210
    %v215 = vadd.f32 %v205, %v210
    %v216 = vadd.f32 %v206, %v210
    %v217 = vadd.f32 %v207, %v210
    %v218 = vadd.f32 %v211, 1e-05
    %v219 = vadd.f32 %v212, 1e-05
    %v220 = vadd.f32 %v213, 1e-05
    %v221 = vadd.f32 %v214, 1e-05
    %v222 = vadd.f32 %v215, 1e-05
    %v223 = vadd.f32 %v216, 1e-05
    %v224 = vadd.f32 %v217, 1e-05
    %v225 = vsub.f32 %v53, %v192
    %v226 = vsub.f32 %v54, %v193
    %v227 = vsub.f32 %v55, %v194
    %v228 = vsub.f32 %v56, %v195
    %v229 = vsub.f32 %v57, %v196
    %v230 = vsub.f32 %v58, %v197
    %v231 = vsub.f32 %v59, %v198
    %v232 = vrsqrt.pop %v218
    %v233 = vrsqrt.pop %v219
    %v234 = vrsqrt.pop %v220
    %v235 = vrsqrt.pop %v221
    %v236 = vrsqrt.pop %v222
    %v237 = vrsqrt.pop %v223
    %v238 = vrsqrt.pop %v224
    %v239 = vmul.f32 %v225, %v232
    %v240 = vmul.f32 %v226, %v233
    %v241 = vmul.f32 %v227, %v234
    %v242 = vmul.f32 %v228, %v235
    %v243 = vmul.f32 %v229, %v236
    %v244 = vmul.f32 %v230, %v237
    %v245 = vmul.f32 %v231, %v238
    %v246 = vld [vmem:[%s2] sm:$0x1]
    %v248 = vlaneseq
    %v249 = vshrl.u32 %v248, 7
    %v250 = vsub.s32 0, %v249
    %v251 = vrot.slane %v246, %v250
    %v253 = vmul.f32 %v239, %v251
    %v254 = vmul.f32 %v240, %v251
    %v255 = vmul.f32 %v241, %v251
    %v256 = vmul.f32 %v242, %v251
    %v257 = vmul.f32 %v243, %v251
    %v258 = vmul.f32 %v244, %v251
    %v259 = vmul.f32 %v245, %v251
    %v260 = vld [vmem:[%s3] sm:$0x1]
    %v262 = vlaneseq
    %v263 = vshrl.u32 %v262, 7
    %v264 = vsub.s32 0, %v263
    %v265 = vrot.slane %v260, %v264
    %v267 = vadd.f32 %v253, %v265
    %v268 = vadd.f32 %v254, %v265
    %v269 = vadd.f32 %v255, %v265
    %v270 = vadd.f32 %v256, %v265
    %v271 = vadd.f32 %v257, %v265
    %v272 = vadd.f32 %v258, %v265
    %v273 = vadd.f32 %v259, %v265
    %274 = vst [vmem:[#allocation7] sm:$0xff] %v267
    %275 = vst [vmem:[#allocation7 + $0x8] sm:$0xff] %v268
    %276 = vst [vmem:[#allocation7 + $0x10] sm:$0xff] %v269
    %277 = vst [vmem:[#allocation7 + $0x18] sm:$0xff] %v270
    %278 = vst [vmem:[#allocation7 + $0x20] sm:$0xff] %v271
    %279 = vst [vmem:[#allocation7 + $0x28] sm:$0xff] %v272
    %280 = vst [vmem:[#allocation7 + $0x30] sm:$0x3] %v273
    // Predicated region
    $region34: #{tpu_custom_call.1} parent=1 // pred_check
      _
    $region35: #{tpu_custom_call.1} parent=1 // pred_check_branch
      %282 = sbr.rel (0) target = $region37
    $region36: #{tpu_custom_call.1} parent=1 // pred_region
      %s284 = ssub.s32 896, 896
      %285 = vsyncadd [#allocation4], %s284
      %s286 = sshll.u32 [#allocation7], 4
      %s287 = int_to_ptr.vmem [resolvable:$true] %s286
      %292 = dma.vmem_to_hbm [thread:$0]  %s287, 896, %s6, [#allocation4], 128, 128, 8
    $region37: #{tpu_custom_call.1} parent=1 // pred_fallthru
      _
    // Predicated region
    $region38: #{tpu_custom_call.1} parent=1 // pred_check
      _
    $region39: #{tpu_custom_call.1} parent=1 // pred_check_branch
      %294 = sbr.rel (0) target = $region41
    $region40: #{tpu_custom_call.1} parent=1 // pred_region
      %s296 = ssub.s32 16, 16
      %297 = vsyncadd [#allocation9], %s296
      %s299 = sshll.u32 [#allocation8], 4
      %s300 = int_to_ptr.vmem [resolvable:$true] %s299
      %302 = dma.vmem_to_hbm [thread:$0]  %s300, 16, %s7, [#allocation9]
    $region41: #{tpu_custom_call.1} parent=1 // pred_fallthru
      _
    // Predicated region
    $region42: #{tpu_custom_call.1} parent=1 // pred_check
      _
    $region43: #{tpu_custom_call.1} parent=1 // pred_check_branch
      %304 = sbr.rel (0) target = $region45
    $region44: #{tpu_custom_call.1} parent=1 // pred_region
      %s306 = ssub.s32 16, 16
      %307 = vsyncadd [#allocation9], %s306
      %s309 = sshll.u32 [#allocation10], 4
      %s310 = int_to_ptr.vmem [resolvable:$true] %s309
      %312 = dma.vmem_to_hbm [thread:$0]  %s310, 16, %s8, [#allocation9]
    $region45: #{tpu_custom_call.1} parent=1 // pred_fallthru
      _
    // Predicated region
    $region46: #{tpu_custom_call.1} parent=1 // pred_check
      _
    $region47: #{tpu_custom_call.1} parent=1 // pred_check_branch
      %314 = sbr.rel (0) target = $region49
    $region48: #{tpu_custom_call.1} parent=1 // pred_region
      %315 = dma.done [#allocation4], 896
    $region49: #{tpu_custom_call.1} parent=1 // pred_fallthru
      _
    // Predicated region
    $region50: #{tpu_custom_call.1} parent=1 // pred_check
      _
    $region51: #{tpu_custom_call.1} parent=1 // pred_check_branch
      %317 = sbr.rel (0) target = $region53
    $region52: #{tpu_custom_call.1} parent=1 // pred_region
      %318 = dma.done [#allocation9], 16
    $region53: #{tpu_custom_call.1} parent=1 // pred_fallthru
      _
    // Predicated region
    $region54: #{tpu_custom_call.1} parent=1 // pred_check
      _
    $region55: #{tpu_custom_call.1} parent=1 // pred_check_branch
      %320 = sbr.rel (0) target = $region57
    $region56: #{tpu_custom_call.1} parent=1 // pred_region
      %321 = dma.done [#allocation9], 16
    $region57: #{tpu_custom_call.1} parent=1 // pred_fallthru
      _
    %322 = vsyncpa [#allocation3], 1
    %323 = vsyncpa [#allocation4], 1
    %324 = vsyncpa [#allocation9], 1
    %325 = vsyncpa [#allocation5], 1

</llo_original>
